<compile_context>
chip_gen: v7x
topology: tpu7x:2x2x1
jax: 0.10.0
libtpu: 0.0.40
codegen_flags: <defaults>
</compile_context>

<pallas_src>
import jax
import jax.numpy as jnp
from jax.experimental import pallas as pl
from jax.experimental.pallas import tpu as pltpu

_MINOR_CHOICES = (1024, 512, 256, 128)  # lane-dense minor widths (multiples of 128)
_TARGET_TILE_BYTES = 4 << 20            # ~4 MiB per block buffer (near roofline plateau)
_VMEM_LIMIT_BYTES = 32 << 20            # double-buffered in+out 4 MiB tiles = 16 MiB
_SMALL_INPUT_ELEMS = 64 * 128           # below this, pallas overhead dominates

_CORE_PARALLEL = getattr(pltpu, "CORE_PARALLEL", None)


def _scheduler_net_kernel(params_ref, x_ref, o_ref):
    # params_ref: SMEM (4,) = [w1, b1, w2, b2]
    w1 = params_ref[0]
    b1 = params_ref[1]
    w2 = params_ref[2]
    b2 = params_ref[3]
    h = jnp.maximum(x_ref[...] * w1 + b1, 0.0)   # conv1 (1x1, 1ch) + ReLU
    o_ref[...] = h * w2 + b2                     # conv2 (1x1, 1ch)


def _slab_layout(total):
    """Pick (rows, minor, pad) for a lane-dense 2-D slab with no/minimal padding."""
    for minor in _MINOR_CHOICES:
        if total % minor == 0:
            return total // minor, minor, 0
    # Fallback only when total isn't a multiple of 128 (never for the NCHW test shapes):
    # pad the flat length to the next lane multiple (< 512 B of extra traffic).
    minor = 128
    rows = -(-total // minor)
    return rows, minor, rows * minor - total


def _tile_rows(rows, minor):
    """Rows per block: ~4 MiB, multiple of 8; single full-array block when it fits."""
    cap = max(8, (_TARGET_TILE_BYTES // (minor * 4)) // 8 * 8)
    return rows if rows <= cap else cap


def scheduler_test_net_forward(x_nchw, params, *, use_pallas=None):
    """x_nchw: (N, 1, H, W) float32.  params: (4,) f32 = [w1, b1, w2, b2]."""
    orig_shape = x_nchw.shape
    total = int(x_nchw.size)

    if use_pallas is None:
        use_pallas = total >= _SMALL_INPUT_ELEMS
    if not use_pallas:
        # Tiny inputs: XLA's fused elementwise op beats the fixed pallas_call cost.
        w1, b1, w2, b2 = params[0], params[1], params[2], params[3]
        return jnp.maximum(x_nchw * w1 + b1, 0.0) * w2 + b2

    rows, minor, pad = _slab_layout(total)
    x_flat = x_nchw.reshape(-1)
    if pad:
        x_flat = jnp.pad(x_flat, (0, pad))
    x2d = x_flat.reshape(rows, minor)

    tile_r = _tile_rows(rows, minor)
    num_tiles = -(-rows // tile_r)   # ragged last block: Pallas masks the boundary

    cost = pl.CostEstimate(
        flops=5 * rows * minor,               # 2 mul + 2 add + 1 max per element
        transcendentals=0,
        bytes_accessed=2 * 4 * rows * minor,  # actual slab read + write, f32
    )

    def launch(dim_sem):
        return pl.pallas_call(
            _scheduler_net_kernel,
            out_shape=jax.ShapeDtypeStruct((rows, minor), jnp.float32),
            grid=(num_tiles,),
            in_specs=[
                pl.BlockSpec(memory_space=pltpu.SMEM),             # (4,) scalar params
                pl.BlockSpec((tile_r, minor), lambda i: (i, 0)),   # pipelined row tiles
            ],
            out_specs=pl.BlockSpec((tile_r, minor), lambda i: (i, 0)),
            compiler_params=pltpu.CompilerParams(
                dimension_semantics=(dim_sem,),
                vmem_limit_bytes=_VMEM_LIMIT_BYTES,
            ),
            cost_estimate=cost,
        )(params, x2d)

    # v7x: CORE_PARALLEL splits the row-tile axis across both TensorCores (each with
    # its own DMA path).  Fall back to portable "parallel" if this chip / JAX build
    # rejects it (no-op perf-wise on single-core v5e/v6e).
    sems = []
    if _CORE_PARALLEL is not None and num_tiles > 1:
        sems.append(_CORE_PARALLEL)
    sems.append("parallel")

    out2d = None
    last_err = None
    for k, sem in enumerate(sems):
        try:
            out2d = launch(sem)
            if k + 1 < len(sems):
                jax.block_until_ready(out2d)  # surface lowering errors while fallback remains
            break
        except Exception as e:  # noqa: BLE001 — fall back to the portable semantics
            last_err = e
            out2d = None
    if out2d is None:
        raise last_err

    if pad:
        return out2d.reshape(-1)[:total].reshape(orig_shape)
    return out2d.reshape(orig_shape)


def _reference(x, w1, b1, w2, b2):
    return jnp.maximum(x * w1 + b1, 0.0) * w2 + b2


if __name__ == "__main__":
    key = jax.random.PRNGKey(0)
    kx, k1, k2, k3, k4, kx2, kx3 = jax.random.split(key, 7)

    # PyTorch Conv2d(1,1,1) default init: U(-1/sqrt(fan_in), 1/sqrt(fan_in)), fan_in=1.
    w1 = jax.random.uniform(k1, (), minval=-1.0, maxval=1.0, dtype=jnp.float32)
    b1 = jax.random.uniform(k2, (), minval=-1.0, maxval=1.0, dtype=jnp.float32)
    w2 = jax.random.uniform(k3, (), minval=-1.0, maxval=1.0, dtype=jnp.float32)
    b2 = jax.random.uniform(k4, (), minval=-1.0, maxval=1.0, dtype=jnp.float32)
    params = jnp.stack([w1, b1, w2, b2]).astype(jnp.float32)

    # Small NCHW shape implied by the module (C=1).  Force the Pallas path so the
    # kernel itself is exercised; also verify the default small-input fast path.
    N, C, H, W = 2, 1, 16, 16
    x = jax.random.normal(kx, (N, C, H, W), dtype=jnp.float32)
    out = jax.block_until_ready(scheduler_test_net_forward(x, params, use_pallas=True))
    ref = _reference(x, w1, b1, w2, b2)
    assert out.shape == (N, C, H, W)
    assert jnp.allclose(out, ref, atol=1e-5, rtol=1e-5)
    out_fast = jax.block_until_ready(scheduler_test_net_forward(x, params))
    assert jnp.allclose(out_fast, ref, atol=1e-5, rtol=1e-5)

    # Medium shape: wide-minor slab (minor=1024, rows=600), single full-array block,
    # zero padding / zero extra copies.
    x_med = jax.random.normal(kx2, (2, 1, 600, 512), dtype=jnp.float32)
    out_med = jax.block_until_ready(scheduler_test_net_forward(x_med, params))
    assert jnp.allclose(out_med, _reference(x_med, w1, b1, w2, b2), atol=1e-5, rtol=1e-5)

    # Larger shape: multi-tile grid (rows=3000, tile=1024) with a ragged last block,
    # still zero padding / zero extra copies.
    x_big = jax.random.normal(kx3, (3, 1, 1000, 1024), dtype=jnp.float32)
    out_big = jax.block_until_ready(scheduler_test_net_forward(x_big, params))
    assert out_big.shape == x_big.shape
    assert jnp.allclose(out_big, _reference(x_big, w1, b1, w2, b2), atol=1e-5, rtol=1e-5)

    print("KERNEL_OK")
</pallas_src>

<mosaic_0001>
module attributes {stable_mosaic.version = 11 : i64} {
  func.func @_scheduler_net_kernel(%arg0: i32, %arg1: memref<4xf32, #tpu.memory_space<smem>>, %arg2: memref<1x512xf32, #tpu.memory_space<vmem>>, %arg3: memref<1x512xf32, #tpu.memory_space<vmem>>) attributes {dimension_semantics = [#tpu.dimension_semantics<parallel>], iteration_bounds = array<i64: 1>, scalar_prefetch = 0 : i64, scratch_operands = 0 : i64, tpu.core_type = #tpu.core_type<tc>, window_params = [{transform_indices = @transform_0, window_bounds = array<i64: 4>}, {transform_indices = @transform_1, window_bounds = array<i64: 1, 512>}, {transform_indices = @transform_2, window_bounds = array<i64: 1, 512>}]} {
    %c0 = arith.constant 0 : index
    %0 = memref.load %arg1[%c0] : memref<4xf32, #tpu.memory_space<smem>>
    %c1 = arith.constant 1 : index
    %1 = memref.load %arg1[%c1] : memref<4xf32, #tpu.memory_space<smem>>
    %c2 = arith.constant 2 : index
    %2 = memref.load %arg1[%c2] : memref<4xf32, #tpu.memory_space<smem>>
    %c3 = arith.constant 3 : index
    %3 = memref.load %arg1[%c3] : memref<4xf32, #tpu.memory_space<smem>>
    %c0_0 = arith.constant 0 : index
    %c0_1 = arith.constant 0 : index
    %4 = vector.load %arg2[%c0_0, %c0_1] : memref<1x512xf32, #tpu.memory_space<vmem>>, vector<1x512xf32>
    %5 = vector.broadcast %0 : f32 to vector<1x512xf32>
    %6 = arith.mulf %4, %5 : vector<1x512xf32>
    %7 = vector.broadcast %1 : f32 to vector<1x512xf32>
    %8 = arith.addf %6, %7 : vector<1x512xf32>
    %cst = arith.constant 0.000000e+00 : f32
    %9 = vector.broadcast %cst : f32 to vector<1x512xf32>
    %10 = arith.maximumf %8, %9 : vector<1x512xf32>
    %11 = vector.broadcast %2 : f32 to vector<1x512xf32>
    %12 = arith.mulf %10, %11 : vector<1x512xf32>
    %13 = vector.broadcast %3 : f32 to vector<1x512xf32>
    %14 = arith.addf %12, %13 : vector<1x512xf32>
    %c0_2 = arith.constant 0 : index
    %c0_3 = arith.constant 0 : index
    %15 = vector.load %arg3[%c0_2, %c0_3] : memref<1x512xf32, #tpu.memory_space<vmem>>, vector<1x512xf32>
    tpu.vector_store %arg3[%c0_2, %c0_3], %14 {strides = array<i32>} : memref<1x512xf32, #tpu.memory_space<vmem>>, vector<1x512xf32>,
    return
  }
  func.func @transform_0(%arg0: i32) -> i32 {
    %c0_i32 = arith.constant 0 : i32
    %c0_i32_0 = arith.constant 0 : i32
    return %c0_i32 : i32
  }
  func.func @transform_1(%arg0: i32) -> (i32, i32) {
    %c0_i32 = arith.constant 0 : i32
    %c0_i32_0 = arith.constant 0 : i32
    return %arg0, %c0_i32 : i32, i32
  }
  func.func @transform_2(%arg0: i32) -> (i32, i32) {
    %c0_i32 = arith.constant 0 : i32
    %c0_i32_0 = arith.constant 0 : i32
    return %arg0, %c0_i32 : i32, i32
  }
}

</mosaic_0001>

<llo_original>
// kernel: tpu_custom_call.1
$region0: #{tpu_custom_call.1}
  #allocation0 [shape = 'u32[]', space=smem, size = 0x4, offset = 0x4, fixed_abs, tag = 'smem constant byte address 0x4 - core index']
  #allocation1 [shape = 'u32[144,128]{1,0:T(1,128)}', space=vmem, size = 0x12000, scoped, tag = 'internal scratch']
  %s0 = inlined_call_operand.hbm [shape: f32[4], index: 0, kind: input, shape index: {}]
  %s1 = inlined_call_operand.hbm [shape: f32[1,512], index: 1, kind: input, shape index: {}]
  %s2 = inlined_call_operand.hbm [shape: f32[1,512], index: 2, kind: output, shape index: {}]
  %s3 = sld [smem:[#allocation0]]
  $region26: #{tpu_custom_call.1} parent=0
    _
  %s5 = ssub.s32 1, %s3
  %s6 = scalar_select 0, %s5, %s3
  $region1: #{tpu_custom_call.1} parent=0
    #allocation2 [shape = 'u8[512]{0}', space=smem, size = 0x200, scoped, tag = 'input window, operand 0, single buffered']
    #allocation3 [shape = 's32[1]{0}', space=sflag, size = 0x4, scoped, tag = 'scoped memory for tpu_custom_call.1']
    #allocation4 [shape = 's32[1]{0}', space=sflag, size = 0x4, scoped, tag = 'scoped memory for tpu_custom_call.1']
    #allocation5 [shape = 's32[1]{0}', space=sflag, size = 0x4, scoped, tag = 'scoped memory for tpu_custom_call.1']
    #allocation6 [shape = 'u8[2048]{0}', space=vmem, size = 0x800, scoped, tag = 'input window, operand 1, single buffered']
    #allocation7 [shape = 'u8[2048]{0}', space=vmem, size = 0x800, scoped, tag = 'output window, operand 0, single buffered']
    %7 = vsyncpa [#allocation5], 0
    %8 = vsyncpa [#allocation3], 0
    %9 = vsyncpa [#allocation4], 0
    // Predicated region
    $region2: #{tpu_custom_call.1} parent=1 // pred_check
      _
    $region3: #{tpu_custom_call.1} parent=1 // pred_check_branch
      %11 = sbr.rel (0) target = $region5
    $region4: #{tpu_custom_call.1} parent=1 // pred_region
      %s13 = ssub.s32 16, 16
      %14 = vsyncadd [#allocation5], %s13
      %17 = dma.hbm_to_smem %s0, 16, [#allocation2], [#allocation5]
    $region5: #{tpu_custom_call.1} parent=1 // pred_fallthru
      _
    // Predicated region
    $region6: #{tpu_custom_call.1} parent=1 // pred_check
      _
    $region7: #{tpu_custom_call.1} parent=1 // pred_check_branch
      %19 = sbr.rel (0) target = $region9
    $region8: #{tpu_custom_call.1} parent=1 // pred_region
      %s21 = ssub.s32 64, 64
      %22 = vsyncadd [#allocation3], %s21
      %s24 = sshll.u32 [#allocation6], 4
      %s25 = int_to_ptr.vmem [resolvable:$true] %s24
      %27 = dma.hbm_to_vmem [thread:$0]  %s1, 64, %s25, [#allocation3]
    $region9: #{tpu_custom_call.1} parent=1 // pred_fallthru
      _
    // Predicated region
    $region10: #{tpu_custom_call.1} parent=1 // pred_check
      _
    $region11: #{tpu_custom_call.1} parent=1 // pred_check_branch
      %29 = sbr.rel (0) target = $region13
    $region12: #{tpu_custom_call.1} parent=1 // pred_region
      %30 = dma.done [#allocation5], 16
    $region13: #{tpu_custom_call.1} parent=1 // pred_fallthru
      _
    // Predicated region
    $region14: #{tpu_custom_call.1} parent=1 // pred_check
      _
    $region15: #{tpu_custom_call.1} parent=1 // pred_check_branch
      %32 = sbr.rel (0) target = $region17
    $region16: #{tpu_custom_call.1} parent=1 // pred_region
      %33 = dma.done [#allocation3], 64
    $region17: #{tpu_custom_call.1} parent=1 // pred_fallthru
      _
    %34 = sfence
    %s35 = sld [smem:[#allocation2]]
    %s36 = sld [smem:[#allocation2 + $0x1]]
    %s37 = sld [smem:[#allocation2 + $0x2]]
    %s38 = sld [smem:[#allocation2 + $0x3]]
    %v39 = vld [vmem:[#allocation6] sm:$0xf]
    %v40 = vstv %s35
    %v41 = vmul.f32 %v39, %v40
    %v42 = vstv %s36
    %v43 = vadd.f32 %v41, %v42
    %v44 = vmax.f32 %v43, 0.0
    %v45 = vstv %s37
    %v46 = vmul.f32 %v44, %v45
    %v47 = vstv %s38
    %v48 = vadd.f32 %v46, %v47
    %v49 = vlaneseq
    %vm50 = vcmp.ge.s32.totalorder %v49, 0
    %vm51 = vcmp.lt.s32.totalorder %v49, 512
    %vm52 = vmand %vm50, %vm51
    %53 = vst.msk [vmem:[#allocation7] sm:$0xf] %vm52, %v48
    // Predicated region
    $region18: #{tpu_custom_call.1} parent=1 // pred_check
      _
    $region19: #{tpu_custom_call.1} parent=1 // pred_check_branch
      %55 = sbr.rel (0) target = $region21
    $region20: #{tpu_custom_call.1} parent=1 // pred_region
      %s57 = ssub.s32 64, 64
      %58 = vsyncadd [#allocation4], %s57
      %s60 = sshll.u32 [#allocation7], 4
      %s61 = int_to_ptr.vmem [resolvable:$true] %s60
      %63 = dma.vmem_to_hbm [thread:$0]  %s61, 64, %s2, [#allocation4]
    $region21: #{tpu_custom_call.1} parent=1 // pred_fallthru
      _
    // Predicated region
    $region22: #{tpu_custom_call.1} parent=1 // pred_check
      _
    $region23: #{tpu_custom_call.1} parent=1 // pred_check_branch
      %65 = sbr.rel (0) target = $region25
    $region24: #{tpu_custom_call.1} parent=1 // pred_region
      %66 = dma.done [#allocation4], 64
    $region25: #{tpu_custom_call.1} parent=1 // pred_fallthru
      _
    %67 = vsyncpa [#allocation3], 1
    %68 = vsyncpa [#allocation4], 1
    %69 = vsyncpa [#allocation5], 1

</llo_original>
